<compile_context>
chip_gen: v6e
topology: v6e:2x2x1
jax: 0.10.0
libtpu: 0.0.40
codegen_flags: <defaults>
</compile_context>

<pallas_src>
import functools
import math

import jax
import jax.numpy as jnp
from jax.experimental import pallas as pl
from jax.experimental.pallas import tpu as pltpu


# ----------------------------- pass 1: fused QKV projection -----------------------------

def _qkv_proj_kernel(x_ref, w_ref, q_ref, k_ref, v_ref, *, d_pad):
    # One wide (Tp, D) x (D, 3D) matmul, f32 accumulation on the MXU.
    qkv = jnp.dot(x_ref[...], w_ref[...], preferred_element_type=jnp.float32)
    # Static, 128-aligned lane slices -> cheap; Q was pre-scaled via the weights.
    q_ref[...] = qkv[:, :d_pad].astype(q_ref.dtype)
    k_ref[...] = qkv[:, d_pad:2 * d_pad].astype(k_ref.dtype)
    v_ref[...] = qkv[:, 2 * d_pad:].astype(v_ref.dtype)


# ----------------------------- pass 2: flash attention ----------------------------------

def _flash_attn_kernel(*refs, masked):
    if masked:
        q_ref, k_ref, v_ref, bias_ref, o_ref, m_sc, l_sc, acc_sc = refs
    else:
        q_ref, k_ref, v_ref, o_ref, m_sc, l_sc, acc_sc = refs
        bias_ref = None

    ki = pl.program_id(1)
    nk = pl.num_programs(1)

    # ---- reset online-softmax state at the first key tile of each query tile ----
    @pl.when(ki == 0)
    def _():
        m_sc[...] = jnp.full_like(m_sc, -1e30)   # large finite, never -inf
        l_sc[...] = jnp.zeros_like(l_sc)
        acc_sc[...] = jnp.zeros_like(acc_sc)

    # ---- scores: NT dot_general (contract last dims) — no k.T / vxpose ----
    s = jax.lax.dot_general(
        q_ref[...], k_ref[...],
        dimension_numbers=(((1,), (1,)), ((), ())),
        preferred_element_type=jnp.float32,
    )  # (Tq, Tk) f32; 1/sqrt(d_k) was folded into Q at projection time.

    if masked:
        # Precomputed (1, Tk) key-padding bias (only present when seq < s_pad);
        # no per-step iota / compare / select.
        s = s + bias_ref[...]

    # ---- online softmax accumulation ----
    m_prev = m_sc[...]
    m_new = jnp.maximum(m_prev, jnp.max(s, axis=-1, keepdims=True))
    alpha = jnp.exp(m_prev - m_new)
    # Subtract in f32, cast once, exp in bf16 (EUP bf16 on v6e/v7x); feeds the
    # PV matmul with no extra cast.  The row-sum accumulates in f32.
    p = jnp.exp((s - m_new).astype(jnp.bfloat16))
    l_sc[...] = alpha * l_sc[...] + jnp.sum(
        p.astype(jnp.float32), axis=-1, keepdims=True)
    acc_sc[...] = alpha * acc_sc[...] + jnp.dot(
        p, v_ref[...], preferred_element_type=jnp.float32)
    m_sc[...] = m_new

    # ---- finalize on the last key tile ----
    @pl.when(ki == nk - 1)
    def _():
        inv_l = pl.reciprocal(l_sc[...], approx=True)
        o_ref[...] = (acc_sc[...] * inv_l).astype(o_ref.dtype)


# ----------------------------------- wrapper --------------------------------------------

def self_attention_v1(x, w_query, w_key, w_value, *, block_q=256, block_k=256):
    """x: (seq, d_in) f32.  w_*: (d_in, d_out) f32 (SelfAttention_v1 layout, x @ W).

    block_q / block_k are sequence tile sizes (multiples of 128).  Defaults of
    256 target the 256-wide MXU on v6e/v7x; they are clamped to the padded
    sequence length for small problems.  Sweep block_k up to 512 on v6e/v5e;
    keep an eye on the 64 MiB VMEM on v7x (the wrapper raises the scoped VMEM
    limit automatically when an estimate exceeds the default).
    """
    seq, d_in = x.shape
    d_out = w_query.shape[1]
    assert w_query.shape == (d_in, d_out)
    assert w_key.shape == (d_in, d_out) and w_value.shape == (d_in, d_out)
    assert block_q % 128 == 0 and block_k % 128 == 0

    def round_up(n, m):
        return ((n + m - 1) // m) * m

    d_pad = round_up(max(d_in, d_out, 128), 128)
    seq128 = round_up(seq, 128)
    block_q = max(128, min(block_q, seq128))
    block_k = max(128, min(block_k, seq128))
    s_pad = round_up(seq, math.lcm(block_q, block_k))

    scale = 1.0 / math.sqrt(d_out)   # keys.shape[-1] ** 0.5 in the PyTorch module

    # Zero-pad to TPU-friendly tiles (padding keeps the matmuls exact; padded
    # key positions are masked via the bias below).  MXU inputs are bf16.
    x_p = jnp.pad(x.astype(jnp.float32),
                  ((0, s_pad - seq), (0, d_pad - d_in))).astype(jnp.bfloat16)

    def pad_w(w):
        return jnp.pad(w.astype(jnp.float32),
                       ((0, d_pad - d_in), (0, d_pad - d_out)))

    # Fold 1/sqrt(d_k) into W_query so Q is pre-scaled for free.
    w_qkv = jnp.concatenate(
        [pad_w(w_query) * scale, pad_w(w_key), pad_w(w_value)], axis=1
    ).astype(jnp.bfloat16)                                           # (D, 3D)

    # ---------------- pass 1: QKV projection ----------------
    proj_block = block_q                      # divides s_pad by construction
    q_s, k_s, v_s = pl.pallas_call(
        functools.partial(_qkv_proj_kernel, d_pad=d_pad),
        out_shape=tuple(jax.ShapeDtypeStruct((s_pad, d_pad), jnp.bfloat16)
                        for _ in range(3)),
        grid_spec=pltpu.PrefetchScalarGridSpec(
            num_scalar_prefetch=0,
            grid=(s_pad // proj_block,),
            in_specs=[
                pl.BlockSpec((proj_block, d_pad), lambda i: (i, 0)),       # x tile
                pl.BlockSpec((d_pad, 3 * d_pad), lambda i: (0, 0)),        # [Wq*s|Wk|Wv]
            ],
            out_specs=[
                pl.BlockSpec((proj_block, d_pad), lambda i: (i, 0)),
                pl.BlockSpec((proj_block, d_pad), lambda i: (i, 0)),
                pl.BlockSpec((proj_block, d_pad), lambda i: (i, 0)),
            ],
        ),
        compiler_params=pltpu.CompilerParams(dimension_semantics=("parallel",)),
    )(x_p, w_qkv)

    # ---------------- pass 2: flash attention ----------------
    masked = seq < s_pad
    grid = (s_pad // block_q, s_pad // block_k)

    in_specs = [
        pl.BlockSpec((block_q, d_pad), lambda qi, ki: (qi, 0)),   # Q (pre-scaled)
        pl.BlockSpec((block_k, d_pad), lambda qi, ki: (ki, 0)),   # K
        pl.BlockSpec((block_k, d_pad), lambda qi, ki: (ki, 0)),   # V
    ]
    inputs = [q_s, k_s, v_s]
    if masked:
        bias = jnp.where(jnp.arange(s_pad) < seq, 0.0, -1e30)
        inputs.append(bias.astype(jnp.float32).reshape(1, s_pad))
        in_specs.append(pl.BlockSpec((1, block_k), lambda qi, ki: (0, ki)))

    # VMEM budget: double-buffered input/output blocks + f32 scratch.  Only raise
    # the scoped limit when the estimate exceeds the conservative default.
    bf16, f32 = 2, 4
    vmem_est = (
        2 * (block_q * d_pad * bf16)             # Q stream (double-buffered)
        + 2 * 2 * (block_k * d_pad * bf16)       # K + V streams
        + 2 * (block_q * d_pad * bf16)           # output stream
        + block_q * d_pad * f32                  # acc scratch
        + 2 * block_q * 128 * f32                # m, l scratch (lane-padded)
        + (2 * block_k * f32 if masked else 0)   # bias stream
    )
    vmem_limit = (int(vmem_est * 1.5) + (4 << 20)) if vmem_est > (24 << 20) else None

    out_padded = pl.pallas_call(
        functools.partial(_flash_attn_kernel, masked=masked),
        out_shape=jax.ShapeDtypeStruct((s_pad, d_pad), jnp.bfloat16),
        grid_spec=pltpu.PrefetchScalarGridSpec(
            num_scalar_prefetch=0,
            grid=grid,
            in_specs=in_specs,
            out_specs=pl.BlockSpec((block_q, d_pad), lambda qi, ki: (qi, 0)),
            scratch_shapes=[
                pltpu.VMEM((block_q, 1), jnp.float32),      # running max
                pltpu.VMEM((block_q, 1), jnp.float32),      # running denominator
                pltpu.VMEM((block_q, d_pad), jnp.float32),  # output accumulator
            ],
        ),
        compiler_params=pltpu.CompilerParams(
            dimension_semantics=("parallel", "arbitrary"),
            vmem_limit_bytes=vmem_limit),
    )(*inputs)

    # Keep the module's f32 output semantics after slicing away the padding.
    return out_padded[:seq, :d_out].astype(jnp.float32)


def _reference(x, w_query, w_key, w_value):
    """Pure-JAX f32 reference mirroring the PyTorch SelfAttention_v1 forward."""
    q = x @ w_query
    k = x @ w_key
    v = x @ w_value
    scores = q @ k.T
    weights = jax.nn.softmax(scores / (k.shape[-1] ** 0.5), axis=-1)
    return weights @ v


if __name__ == "__main__":
    # Same token matrix the original script uses: (seq=6, d_in=3).
    x = jnp.array(
        [[0.43, 0.15, 0.89],
         [0.55, 0.87, 0.66],
         [0.57, 0.85, 0.64],
         [0.22, 0.58, 0.33],
         [0.77, 0.25, 0.10],
         [0.05, 0.80, 0.55]],
        dtype=jnp.float32,
    )

    d_in, d_out = 3, 2
    key = jax.random.PRNGKey(0)
    kq, kk, kv = jax.random.split(key, 3)
    # torch.rand(d_in, d_out) -> uniform [0, 1)
    w_query = jax.random.uniform(kq, (d_in, d_out), jnp.float32)
    w_key = jax.random.uniform(kk, (d_in, d_out), jnp.float32)
    w_value = jax.random.uniform(kv, (d_in, d_out), jnp.float32)

    out = self_attention_v1(x, w_query, w_key, w_value)
    out = jax.block_until_ready(out)

    ref = _reference(x, w_query, w_key, w_value)
    assert out.shape == (6, 2), out.shape
    # bf16 MXU inputs / bf16 exp / approx reciprocal / bf16 output -> relaxed
    # tolerance against the f32 reference.
    err = jnp.max(jnp.abs(out - ref))
    assert jnp.allclose(out, ref, atol=5e-2, rtol=5e-2), (out, ref, err)

    print("KERNEL_OK")
</pallas_src>

<mosaic_0001>
module attributes {stable_mosaic.version = 11 : i64} {
  func.func @_qkv_proj_kernel(%arg0: i32, %arg1: memref<128x128xbf16, #tpu.memory_space<vmem>>, %arg2: memref<128x384xbf16, #tpu.memory_space<vmem>>, %arg3: memref<128x128xbf16, #tpu.memory_space<vmem>>, %arg4: memref<128x128xbf16, #tpu.memory_space<vmem>>, %arg5: memref<128x128xbf16, #tpu.memory_space<vmem>>) attributes {dimension_semantics = [#tpu.dimension_semantics<parallel>], iteration_bounds = array<i64: 1>, scalar_prefetch = 0 : i64, scratch_operands = 0 : i64, tpu.core_type = #tpu.core_type<tc>, window_params = [{transform_indices = @transform_0, window_bounds = array<i64: 128, 128>}, {pipeline_mode = #tpu.pipeline_mode<synchronous>, transform_indices = @transform_1, window_bounds = array<i64: 128, 384>}, {transform_indices = @transform_2, window_bounds = array<i64: 128, 128>}, {transform_indices = @transform_3, window_bounds = array<i64: 128, 128>}, {transform_indices = @transform_4, window_bounds = array<i64: 128, 128>}]} {
    %c0 = arith.constant 0 : index
    %c0_0 = arith.constant 0 : index
    %0 = vector.load %arg1[%c0, %c0_0] : memref<128x128xbf16, #tpu.memory_space<vmem>>, vector<128x128xbf16>
    %c0_1 = arith.constant 0 : index
    %c0_2 = arith.constant 0 : index
    %1 = vector.load %arg2[%c0_1, %c0_2] : memref<128x384xbf16, #tpu.memory_space<vmem>>, vector<128x384xbf16>
    %cst = arith.constant dense<0.000000e+00> : vector<128x384xf32>
    %2 = tpu.matmul %0, %1, %cst {dimension_numbers = #tpu.dot_dimension_numbers<[1], [0], [0], [1], [0, 0, 1, 1], [], []>} : vector<128x128xbf16>, vector<128x384xbf16>, vector<128x384xf32> -> vector<128x384xf32>
    %3 = vector.extract_strided_slice %2 {offsets = [0, 0], sizes = [128, 128], strides = [1, 1]} : vector<128x384xf32> to vector<128x128xf32>
    %4 = arith.truncf %3 : vector<128x128xf32> to vector<128x128xbf16>
    %c0_3 = arith.constant 0 : index
    %c0_4 = arith.constant 0 : index
    %5 = vector.load %arg3[%c0_3, %c0_4] : memref<128x128xbf16, #tpu.memory_space<vmem>>, vector<128x128xbf16>
    tpu.vector_store %arg3[%c0_3, %c0_4], %4 {strides = array<i32>} : memref<128x128xbf16, #tpu.memory_space<vmem>>, vector<128x128xbf16>,
    %6 = vector.extract_strided_slice %2 {offsets = [0, 128], sizes = [128, 128], strides = [1, 1]} : vector<128x384xf32> to vector<128x128xf32>
    %7 = arith.truncf %6 : vector<128x128xf32> to vector<128x128xbf16>
    %c0_5 = arith.constant 0 : index
    %c0_6 = arith.constant 0 : index
    %8 = vector.load %arg4[%c0_5, %c0_6] : memref<128x128xbf16, #tpu.memory_space<vmem>>, vector<128x128xbf16>
    tpu.vector_store %arg4[%c0_5, %c0_6], %7 {strides = array<i32>} : memref<128x128xbf16, #tpu.memory_space<vmem>>, vector<128x128xbf16>,
    %9 = vector.extract_strided_slice %2 {offsets = [0, 256], sizes = [128, 128], strides = [1, 1]} : vector<128x384xf32> to vector<128x128xf32>
    %10 = arith.truncf %9 : vector<128x128xf32> to vector<128x128xbf16>
    %c0_7 = arith.constant 0 : index
    %c0_8 = arith.constant 0 : index
    %11 = vector.load %arg5[%c0_7, %c0_8] : memref<128x128xbf16, #tpu.memory_space<vmem>>, vector<128x128xbf16>
    tpu.vector_store %arg5[%c0_7, %c0_8], %10 {strides = array<i32>} : memref<128x128xbf16, #tpu.memory_space<vmem>>, vector<128x128xbf16>,
    return
  }
  func.func @transform_0(%arg0: i32) -> (i32, i32) {
    %c0_i32 = arith.constant 0 : i32
    %c0_i32_0 = arith.constant 0 : i32
    return %arg0, %c0_i32 : i32, i32
  }
  func.func @transform_1(%arg0: i32) -> (i32, i32) {
    %c0_i32 = arith.constant 0 : i32
    %c0_i32_0 = arith.constant 0 : i32
    %c0_i32_1 = arith.constant 0 : i32
    return %c0_i32, %c0_i32_0 : i32, i32
  }
  func.func @transform_2(%arg0: i32) -> (i32, i32) {
    %c0_i32 = arith.constant 0 : i32
    %c0_i32_0 = arith.constant 0 : i32
    return %arg0, %c0_i32 : i32, i32
  }
  func.func @transform_3(%arg0: i32) -> (i32, i32) {
    %c0_i32 = arith.constant 0 : i32
    %c0_i32_0 = arith.constant 0 : i32
    return %arg0, %c0_i32 : i32, i32
  }
  func.func @transform_4(%arg0: i32) -> (i32, i32) {
    %c0_i32 = arith.constant 0 : i32
    %c0_i32_0 = arith.constant 0 : i32
    return %arg0, %c0_i32 : i32, i32
  }
}

</mosaic_0001>

<llo_original>
// kernel: tpu_custom_call.1
$region0: #{tpu_custom_call.1}
  #allocation0 [shape = 'u32[]', space=smem, size = 0x4, offset = 0x4, fixed_abs, tag = 'smem constant byte address 0x4 - core index']
  #allocation1 [shape = 'u32[144,128]{1,0:T(1,128)}', space=vmem, size = 0x12000, scoped, tag = 'internal scratch']
  %s0 = inlined_call_operand.hbm [shape: bf16[128,128], index: 0, kind: input, shape index: {}]
  %s1 = inlined_call_operand.hbm [shape: bf16[128,384], index: 1, kind: input, shape index: {}]
  %s2 = inlined_call_operand.hbm [shape: bf16[128,128], index: 2, kind: output, shape index: {0}]
  %s3 = inlined_call_operand.hbm [shape: bf16[128,128], index: 3, kind: output, shape index: {1}]
  %s4 = inlined_call_operand.hbm [shape: bf16[128,128], index: 4, kind: output, shape index: {2}]
  %5 = xla_tuple %s2, %s3, %s4
  %s6 = sld [smem:[#allocation0]]
  $region42: #{tpu_custom_call.1} parent=0
    _
  %s8 = ssub.s32 1, %s6
  %s9 = scalar_select 0, %s8, %s6
  $region1: #{tpu_custom_call.1} parent=0
    #allocation2 [shape = 'u8[32768]{0}', space=vmem, size = 0x8000, scoped, tag = 'input window, operand 0, single buffered']
    #allocation3 [shape = 's32[1]{0}', space=sflag, size = 0x4, scoped, tag = 'scoped memory for tpu_custom_call.1']
    #allocation4 [shape = 's32[1]{0}', space=sflag, size = 0x4, scoped, tag = 'scoped memory for tpu_custom_call.1']
    #allocation5 [shape = 'u8[98304]{0}', space=vmem, size = 0x18000, scoped, tag = 'input window, operand 1, single buffered']
    #allocation6 [shape = 's32[1]{0}', space=sflag, size = 0x4, scoped, tag = 'scoped memory for tpu_custom_call.1']
    #allocation7 [shape = 'u8[32768]{0}', space=vmem, size = 0x8000, scoped, tag = 'output window, operand 0, single buffered']
    #allocation8 [shape = 'u8[32768]{0}', space=vmem, size = 0x8000, scoped, tag = 'output window, operand 1, single buffered']
    #allocation9 [shape = 's32[1]{0}', space=sflag, size = 0x4, scoped, tag = 'scoped memory for tpu_custom_call.1']
    #allocation10 [shape = 'u8[32768]{0}', space=vmem, size = 0x8000, scoped, tag = 'output window, operand 2, single buffered']
    %10 = vsyncpa [#allocation3], 0
    %11 = vsyncpa [#allocation6], 0
    %12 = vsyncpa [#allocation4], 0
    %13 = vsyncpa [#allocation9], 0
    // Predicated region
    $region2: #{tpu_custom_call.1} parent=1 // pred_check
      _
    $region3: #{tpu_custom_call.1} parent=1 // pred_check_branch
      %15 = sbr.rel (0) target = $region5
    $region4: #{tpu_custom_call.1} parent=1 // pred_region
      %s17 = ssub.s32 1024, 1024
      %18 = vsyncadd [#allocation3], %s17
      %s19 = sshll.u32 [#allocation2], 4
      %s20 = int_to_ptr.vmem [resolvable:$true] %s19
      %25 = dma.hbm_to_vmem [thread:$0]  %s0, 1024, %s20, [#allocation3], 64, 64, 4
    $region5: #{tpu_custom_call.1} parent=1 // pred_fallthru
      _
    // Predicated region
    $region6: #{tpu_custom_call.1} parent=1 // pred_check
      _
    $region7: #{tpu_custom_call.1} parent=1 // pred_check_branch
      %27 = sbr.rel (0) target = $region9
    $region8: #{tpu_custom_call.1} parent=1 // pred_region
      %s29 = ssub.s32 3072, 3072
      %30 = vsyncadd [#allocation6], %s29
      %s31 = sshll.u32 [#allocation5], 4
      %s32 = int_to_ptr.vmem [resolvable:$true] %s31
      %37 = dma.hbm_to_vmem [thread:$0]  %s1, 3072, %s32, [#allocation6], 192, 192, 12
    $region9: #{tpu_custom_call.1} parent=1 // pred_fallthru
      _
    // Predicated region
    $region10: #{tpu_custom_call.1} parent=1 // pred_check
      _
    $region11: #{tpu_custom_call.1} parent=1 // pred_check_branch
      %39 = sbr.rel (0) target = $region13
    $region12: #{tpu_custom_call.1} parent=1 // pred_region
      %40 = dma.done [#allocation3], 1024
    $region13: #{tpu_custom_call.1} parent=1 // pred_fallthru
      _
    // Predicated region
    $region14: #{tpu_custom_call.1} parent=1 // pred_check
      _
    $region15: #{tpu_custom_call.1} parent=1 // pred_check_branch
      %42 = sbr.rel (0) target = $region17
    $region16: #{tpu_custom_call.1} parent=1 // pred_region
      %43 = dma.done [#allocation6], 3072
    $region17: #{tpu_custom_call.1} parent=1 // pred_fallthru
      _
    %v45 = vld [vmem:[#allocation2] sm:$0xf]
    %v46 = vld [vmem:[#allocation2 + $0x4] sm:$0xf]
    %v47 = vld [vmem:[#allocation2 + $0x8] sm:$0xf]
    %v48 = vld [vmem:[#allocation2 + $0xc] sm:$0xf]
    %v49 = vld [vmem:[#allocation2 + $0x10] sm:$0xf]
    %v50 = vld [vmem:[#allocation2 + $0x14] sm:$0xf]
    %v51 = vld [vmem:[#allocation2 + $0x18] sm:$0xf]
    %v52 = vld [vmem:[#allocation2 + $0x1c] sm:$0xf]
    %v53 = vld [vmem:[#allocation2 + $0x20] sm:$0xf]
    %v54 = vld [vmem:[#allocation2 + $0x24] sm:$0xf]
    %v55 = vld [vmem:[#allocation2 + $0x28] sm:$0xf]
    %v56 = vld [vmem:[#allocation2 + $0x2c] sm:$0xf]
    %v57 = vld [vmem:[#allocation2 + $0x30] sm:$0xf]
    %v58 = vld [vmem:[#allocation2 + $0x34] sm:$0xf]
    %v59 = vld [vmem:[#allocation2 + $0x38] sm:$0xf]
    %v60 = vld [vmem:[#allocation2 + $0x3c] sm:$0xf]
    %v61 = vld [vmem:[#allocation5] sm:$0xff]
    %v62 = vld [vmem:[#allocation5 + $0x8] sm:$0xf]
    %v63 = vld [vmem:[#allocation5 + $0xc] sm:$0xff]
    %v64 = vld [vmem:[#allocation5 + $0x14] sm:$0xf]
    %v65 = vld [vmem:[#allocation5 + $0x18] sm:$0xff]
    %v66 = vld [vmem:[#allocation5 + $0x20] sm:$0xf]
    %v67 = vld [vmem:[#allocation5 + $0x24] sm:$0xff]
    %v68 = vld [vmem:[#allocation5 + $0x2c] sm:$0xf]
    %v69 = vld [vmem:[#allocation5 + $0x30] sm:$0xff]
    %v70 = vld [vmem:[#allocation5 + $0x38] sm:$0xf]
    %v71 = vld [vmem:[#allocation5 + $0x3c] sm:$0xff]
    %v72 = vld [vmem:[#allocation5 + $0x44] sm:$0xf]
    %v73 = vld [vmem:[#allocation5 + $0x48] sm:$0xff]
    %v74 = vld [vmem:[#allocation5 + $0x50] sm:$0xf]
    %v75 = vld [vmem:[#allocation5 + $0x54] sm:$0xff]
    %v76 = vld [vmem:[#allocation5 + $0x5c] sm:$0xf]
    %v77 = vld [vmem:[#allocation5 + $0x60] sm:$0xff]
    %v78 = vld [vmem:[#allocation5 + $0x68] sm:$0xf]
    %v79 = vld [vmem:[#allocation5 + $0x6c] sm:$0xff]
    %v80 = vld [vmem:[#allocation5 + $0x74] sm:$0xf]
    %v81 = vld [vmem:[#allocation5 + $0x78] sm:$0xff]
    %v82 = vld [vmem:[#allocation5 + $0x80] sm:$0xf]
    %v83 = vld [vmem:[#allocation5 + $0x84] sm:$0xff]
    %v84 = vld [vmem:[#allocation5 + $0x8c] sm:$0xf]
    %v85 = vld [vmem:[#allocation5 + $0x90] sm:$0xff]
    %v86 = vld [vmem:[#allocation5 + $0x98] sm:$0xf]
    %v87 = vld [vmem:[#allocation5 + $0x9c] sm:$0xff]
    %v88 = vld [vmem:[#allocation5 + $0xa4] sm:$0xf]
    %v89 = vld [vmem:[#allocation5 + $0xa8] sm:$0xff]
    %v90 = vld [vmem:[#allocation5 + $0xb0] sm:$0xf]
    %v91 = vld [vmem:[#allocation5 + $0xb4] sm:$0xff]
    %v92 = vld [vmem:[#allocation5 + $0xbc] sm:$0xf]
    %v109 = vunpack.c.l.b16 %v45
    %v110 = vunpack.c.l.b16 %v46
    %v111 = vunpack.c.l.b16 %v47
    %v112 = vunpack.c.l.b16 %v48
    %v113 = vunpack.c.l.b16 %v49
    %v114 = vunpack.c.l.b16 %v50
    %v115 = vunpack.c.l.b16 %v51
    %v116 = vunpack.c.l.b16 %v52
    %v117 = vunpack.c.l.b16 %v53
    %v118 = vunpack.c.l.b16 %v54
    %v119 = vunpack.c.l.b16 %v55
    %v120 = vunpack.c.l.b16 %v56
    %v121 = vunpack.c.l.b16 %v57
    %v122 = vunpack.c.l.b16 %v58
    %v123 = vunpack.c.l.b16 %v59
    %v124 = vunpack.c.l.b16 %v60
    %v125 = vpack.c.b16 %v110, %v109
    %v126 = vpack.c.b16 %v112, %v111
    %v127 = vpack.c.b16 %v114, %v113
    %v128 = vpack.c.b16 %v116, %v115
    %v129 = vpack.c.b16 %v118, %v117
    %v130 = vpack.c.b16 %v120, %v119
    %v131 = vpack.c.b16 %v122, %v121
    %v132 = vpack.c.b16 %v124, %v123
    %v173 = vunpack.c.l.b16 %v61
    %v174 = vunpack.c.h.b16 %v61
    %v175 = vunpack.c.l.b16 %v62
    %v176 = vunpack.c.l.b16 %v63
    %v177 = vunpack.c.h.b16 %v63
    %v178 = vunpack.c.l.b16 %v64
    %v179 = vunpack.c.l.b16 %v65
    %v180 = vunpack.c.h.b16 %v65
    %v181 = vunpack.c.l.b16 %v66
    %v182 = vunpack.c.l.b16 %v67
    %v183 = vunpack.c.h.b16 %v67
    %v184 = vunpack.c.l.b16 %v68
    %v185 = vunpack.c.l.b16 %v69
    %v186 = vunpack.c.h.b16 %v69
    %v187 = vunpack.c.l.b16 %v70
    %v188 = vunpack.c.l.b16 %v71
    %v189 = vunpack.c.h.b16 %v71
    %v190 = vunpack.c.l.b16 %v72
    %v191 = vunpack.c.l.b16 %v73
    %v192 = vunpack.c.h.b16 %v73
    %v193 = vunpack.c.l.b16 %v74
    %v194 = vunpack.c.l.b16 %v75
    %v195 = vunpack.c.h.b16 %v75
    %v196 = vunpack.c.l.b16 %v76
    %v197 = vunpack.c.l.b16 %v77
    %v198 = vunpack.c.h.b16 %v77
    %v199 = vunpack.c.l.b16 %v78
    %v200 = vunpack.c.l.b16 %v79
    %v201 = vunpack.c.h.b16 %v79
    %v202 = vunpack.c.l.b16 %v80
    %v203 = vunpack.c.l.b16 %v81
    %v204 = vunpack.c.h.b16 %v81
    %v205 = vunpack.c.l.b16 %v82
    %v206 = vunpack.c.l.b16 %v83
    %v207 = vunpack.c.h.b16 %v83
    %v208 = vunpack.c.l.b16 %v84
    %v209 = vunpack.c.l.b16 %v85
    %v210 = vunpack.c.h.b16 %v85
    %v211 = vunpack.c.l.b16 %v86
    %v212 = vunpack.c.l.b16 %v87
    %v213 = vunpack.c.h.b16 %v87
    %v214 = vunpack.c.l.b16 %v88
    %v215 = vunpack.c.l.b16 %v89
    %v216 = vunpack.c.h.b16 %v89
    %v217 = vunpack.c.l.b16 %v90
    %v218 = vunpack.c.l.b16 %v91
    %v219 = vunpack.c.h.b16 %v91
    %v220 = vunpack.c.l.b16 %v92
    %v221 = vpack.c.b16 %v176, %v173
    %v222 = vpack.c.b16 %v177, %v174
    %v223 = vpack.c.b16 %v178, %v175
    %v224 = vpack.c.b16 %v182, %v179
    %v225 = vpack.c.b16 %v183, %v180
    %v226 = vpack.c.b16 %v184, %v181
    %v227 = vpack.c.b16 %v188, %v185
    %v228 = vpack.c.b16 %v189, %v186
    %v229 = vpack.c.b16 %v190, %v187
    %v230 = vpack.c.b16 %v194, %v191
    %v231 = vpack.c.b16 %v195, %v192
    %v232 = vpack.c.b16 %v196, %v193
    %v233 = vpack.c.b16 %v200, %v197
    %v234 = vpack.c.b16 %v201, %v198
    %v235 = vpack.c.b16 %v202, %v199
    %v236 = vpack.c.b16 %v206, %v203
    %v237 = vpack.c.b16 %v207, %v204
    %v238 = vpack.c.b16 %v208, %v205
    %v239 = vpack.c.b16 %v212, %v209
    %v240 = vpack.c.b16 %v213, %v210
    %v241 = vpack.c.b16 %v214, %v211
    %v242 = vpack.c.b16 %v218, %v215
    %v243 = vpack.c.b16 %v219, %v216
    %v244 = vpack.c.b16 %v220, %v217
    %269 = vmatprep.subr.bf16.mxu0 %v243
    %270 = vmatpush1.bf16.msra.mxu0 %v242
    %271 = vmatprep.subr.bf16.mxu0 %v240
    %272 = vmatpush1.bf16.msra.mxu0 %v239
    %273 = vmatprep.subr.bf16.mxu0 %v237
    %274 = vmatpush1.bf16.msra.mxu0 %v236
    %275 = vmatprep.subr.bf16.mxu0 %v234
    %276 = vmatpush1.bf16.msra.mxu0 %v233
    %277 = vmatprep.subr.bf16.mxu0 %v231
    %278 = vmatpush1.bf16.msra.mxu0 %v230
    %279 = vmatprep.subr.bf16.mxu0 %v228
    %280 = vmatpush1.bf16.msra.mxu0 %v227
    %281 = vmatprep.subr.bf16.mxu0 %v225
    %282 = vmatpush1.bf16.msra.mxu0 %v224
    %283 = vmatprep.subr.bf16.mxu0 %v222
    %284 = vmatpush1.bf16.msra.mxu0 %v221
    %285 = vmatprep.subr.bf16.mxu0 0
    %286 = vmatpush2.bf16.msra.mxu0 0
    %287 = vmatprep.subr.bf16.mxu0 0
    %288 = vmatpush2.bf16.msra.mxu0 0
    %289 = vmatprep.subr.bf16.mxu0 0
    %290 = vmatpush2.bf16.msra.mxu0 0
    %291 = vmatprep.subr.bf16.mxu0 0
    %292 = vmatpush2.bf16.msra.mxu0 0
    %293 = vmatprep.subr.bf16.mxu0 0
    %294 = vmatpush2.bf16.msra.mxu0 0
    %295 = vmatprep.subr.bf16.mxu0 0
    %296 = vmatpush2.bf16.msra.mxu0 0
    %297 = vmatprep.subr.bf16.mxu0 0
    %298 = vmatpush2.bf16.msra.mxu0 0
    %299 = vmatprep.subr.bf16.mxu0 0
    %300 = vmatpush2.bf16.msra.mxu0 0
    %301 = vmatprep.mubr.bf16.mxu0 0
    %302 = vmatmul.mubr.bf16.gmra.mxu0 %v125
    %v303 = vpop.f32.mrf.mxu0
    %v304 = vadd.f32 0.0, %v303
    %v305 = vpop.f32.mrf.mxu0
    %v306 = vadd.f32 0.0, %v305
    %v307 = vpop.f32.mrf.mxu0
    %v308 = vadd.f32 0.0, %v307
    %v309 = vpop.f32.mrf.mxu0
    %v310 = vadd.f32 0.0, %v309
    %311 = vmatprep.mubr.bf16.mxu0 0
    %312 = vmatmul.mubr.bf16.gmra.mxu0 %v126
    %v313 = vpop.f32.mrf.mxu0
    %v314 = vadd.f32 0.0, %v313
    %v315 = vpop.f32.mrf.mxu0
    %v316 = vadd.f32 0.0, %v315
    %v317 = vpop.f32.mrf.mxu0
    %v318 = vadd.f32 0.0, %v317
    %v319 = vpop.f32.mrf.mxu0
    %v320 = vadd.f32 0.0, %v319
    %321 = vmatprep.mubr.bf16.mxu0 0
    %322 = vmatmul.mubr.bf16.gmra.mxu0 %v127
    %v323 = vpop.f32.mrf.mxu0
    %v324 = vadd.f32 0.0, %v323
    %v325 = vpop.f32.mrf.mxu0
    %v326 = vadd.f32 0.0, %v325
    %v327 = vpop.f32.mrf.mxu0
    %v328 = vadd.f32 0.0, %v327
    %v329 = vpop.f32.mrf.mxu0
    %v330 = vadd.f32 0.0, %v329
    %331 = vmatprep.mubr.bf16.mxu0 0
    %332 = vmatmul.mubr.bf16.gmra.mxu0 %v128
    %v333 = vpop.f32.mrf.mxu0
    %v334 = vadd.f32 0.0, %v333
    %v335 = vpop.f32.mrf.mxu0
    %v336 = vadd.f32 0.0, %v335
    %v337 = vpop.f32.mrf.mxu0
    %v338 = vadd.f32 0.0, %v337
    %v339 = vpop.f32.mrf.mxu0
    %v340 = vadd.f32 0.0, %v339
    %341 = vmatprep.mubr.bf16.mxu0 0
    %342 = vmatmul.mubr.bf16.gmra.mxu0 %v129
    %v343 = vpop.f32.mrf.mxu0
    %v344 = vadd.f32 0.0, %v343
    %v345 = vpop.f32.mrf.mxu0
    %v346 = vadd.f32 0.0, %v345
    %v347 = vpop.f32.mrf.mxu0
    %v348 = vadd.f32 0.0, %v347
    %v349 = vpop.f32.mrf.mxu0
    %v350 = vadd.f32 0.0, %v349
    %351 = vmatprep.mubr.bf16.mxu0 0
    %352 = vmatmul.mubr.bf16.gmra.mxu0 %v130
    %v353 = vpop.f32.mrf.mxu0
    %v354 = vadd.f32 0.0, %v353
    %v355 = vpop.f32.mrf.mxu0
    %v356 = vadd.f32 0.0, %v355
    %v357 = vpop.f32.mrf.mxu0
    %v358 = vadd.f32 0.0, %v357
    %v359 = vpop.f32.mrf.mxu0
    %v360 = vadd.f32 0.0, %v359
    %361 = vmatprep.mubr.bf16.mxu0 0
    %362 = vmatmul.mubr.bf16.gmra.mxu0 %v131
    %v363 = vpop.f32.mrf.mxu0
    %v364 = vadd.f32 0.0, %v363
    %v365 = vpop.f32.mrf.mxu0
    %v366 = vadd.f32 0.0, %v365
    %v367 = vpop.f32.mrf.mxu0
    %v368 = vadd.f32 0.0, %v367
    %v369 = vpop.f32.mrf.mxu0
    %v370 = vadd.f32 0.0, %v369
    %371 = vmatprep.mubr.bf16.mxu0 0
    %372 = vmatmul.mubr.bf16.gmra.mxu0 %v132
    %v373 = vpop.f32.mrf.mxu0
    %v374 = vadd.f32 0.0, %v373
    %v375 = vpop.f32.mrf.mxu0
    %v376 = vadd.f32 0.0, %v375
    %v377 = vpop.f32.mrf.mxu0
    %v378 = vadd.f32 0.0, %v377
    %v379 = vpop.f32.mrf.mxu0
    %v380 = vadd.f32 0.0, %v379
    %381 = vdwg.mxu0
    %382 = vmatprep.subr.bf16.mxu0 0
    %383 = vmatpush1.bf16.msra.mxu0 %v244
    %384 = vmatprep.subr.bf16.mxu0 0
    %385 = vmatpush1.bf16.msra.mxu0 %v241
    %386 = vmatprep.subr.bf16.mxu0 0
    %387 = vmatpush1.bf16.msra.mxu0 %v238
    %388 = vmatprep.subr.bf16.mxu0 0
    %389 = vmatpush1.bf16.msra.mxu0 %v235
    %390 = vmatprep.subr.bf16.mxu0 0
    %391 = vmatpush1.bf16.msra.mxu0 %v232
    %392 = vmatprep.subr.bf16.mxu0 0
    %393 = vmatpush1.bf16.msra.mxu0 %v229
    %394 = vmatprep.subr.bf16.mxu0 0
    %395 = vmatpush1.bf16.msra.mxu0 %v226
    %396 = vmatprep.subr.bf16.mxu0 0
    %397 = vmatpush1.bf16.msra.mxu0 %v223
    %398 = vmatprep.subr.bf16.mxu0 0
    %399 = vmatpush2.bf16.msra.mxu0 0
    %400 = vmatprep.subr.bf16.mxu0 0
    %401 = vmatpush2.bf16.msra.mxu0 0
    %402 = vmatprep.subr.bf16.mxu0 0
    %403 = vmatpush2.bf16.msra.mxu0 0
    %404 = vmatprep.subr.bf16.mxu0 0
    %405 = vmatpush2.bf16.msra.mxu0 0
    %406 = vmatprep.subr.bf16.mxu0 0
    %407 = vmatpush2.bf16.msra.mxu0 0
    %408 = vmatprep.subr.bf16.mxu0 0
    %409 = vmatpush2.bf16.msra.mxu0 0
    %410 = vmatprep.subr.bf16.mxu0 0
    %411 = vmatpush2.bf16.msra.mxu0 0
    %412 = vmatprep.subr.bf16.mxu0 0
    %413 = vmatpush2.bf16.msra.mxu0 0
    %414 = vmatprep.mubr.bf16.mxu0 0
    %415 = vmatmul.mubr.bf16.gmra.mxu0 %v125
    %v416 = vpop.f32.mrf.mxu0
    %v417 = vadd.f32 0.0, %v416
    %v418 = vpop.f32.mrf.mxu0
    %v419 = vpop.f32.mrf.mxu0
    %v420 = vadd.f32 0.0, %v419
    %v421 = vpop.f32.mrf.mxu0
    %422 = vmatprep.mubr.bf16.mxu0 0
    %423 = vmatmul.mubr.bf16.gmra.mxu0 %v126
    %v424 = vpop.f32.mrf.mxu0
    %v425 = vadd.f32 0.0, %v424
    %v426 = vpop.f32.mrf.mxu0
    %v427 = vpop.f32.mrf.mxu0
    %v428 = vadd.f32 0.0, %v427
    %v429 = vpop.f32.mrf.mxu0
    %430 = vmatprep.mubr.bf16.mxu0 0
    %431 = vmatmul.mubr.bf16.gmra.mxu0 %v127
    %v432 = vpop.f32.mrf.mxu0
    %v433 = vadd.f32 0.0, %v432
    %v434 = vpop.f32.mrf.mxu0
    %v435 = vpop.f32.mrf.mxu0
    %v436 = vadd.f32 0.0, %v435
    %v437 = vpop.f32.mrf.mxu0
    %438 = vmatprep.mubr.bf16.mxu0 0
    %439 = vmatmul.mubr.bf16.gmra.mxu0 %v128
    %v440 = vpop.f32.mrf.mxu0
    %v441 = vadd.f32 0.0, %v440
    %v442 = vpop.f32.mrf.mxu0
    %v443 = vpop.f32.mrf.mxu0
    %v444 = vadd.f32 0.0, %v443
    %v445 = vpop.f32.mrf.mxu0
    %446 = vmatprep.mubr.bf16.mxu0 0
    %447 = vmatmul.mubr.bf16.gmra.mxu0 %v129
    %v448 = vpop.f32.mrf.mxu0
    %v449 = vadd.f32 0.0, %v448
    %v450 = vpop.f32.mrf.mxu0
    %v451 = vpop.f32.mrf.mxu0
    %v452 = vadd.f32 0.0, %v451
    %v453 = vpop.f32.mrf.mxu0
    %454 = vmatprep.mubr.bf16.mxu0 0
    %455 = vmatmul.mubr.bf16.gmra.mxu0 %v130
    %v456 = vpop.f32.mrf.mxu0
    %v457 = vadd.f32 0.0, %v456
    %v458 = vpop.f32.mrf.mxu0
    %v459 = vpop.f32.mrf.mxu0
    %v460 = vadd.f32 0.0, %v459
    %v461 = vpop.f32.mrf.mxu0
    %462 = vmatprep.mubr.bf16.mxu0 0
    %463 = vmatmul.mubr.bf16.gmra.mxu0 %v131
    %v464 = vpop.f32.mrf.mxu0
    %v465 = vadd.f32 0.0, %v464
    %v466 = vpop.f32.mrf.mxu0
    %v467 = vpop.f32.mrf.mxu0
    %v468 = vadd.f32 0.0, %v467
    %v469 = vpop.f32.mrf.mxu0
    %470 = vmatprep.mubr.bf16.mxu0 0
    %471 = vmatmul.mubr.bf16.gmra.mxu0 %v132
    %v472 = vpop.f32.mrf.mxu0
    %v473 = vadd.f32 0.0, %v472
    %v474 = vpop.f32.mrf.mxu0
    %v475 = vpop.f32.mrf.mxu0
    %v476 = vadd.f32 0.0, %v475
    %v477 = vpop.f32.mrf.mxu0
    %478 = vdwg.mxu0
    %v479 = vpack.c.bf16 %v308, %v304
    %v480 = vpack.c.bf16 %v318, %v314
    %v481 = vpack.c.bf16 %v328, %v324
    %v482 = vpack.c.bf16 %v338, %v334
    %v483 = vpack.c.bf16 %v348, %v344
    %v484 = vpack.c.bf16 %v358, %v354
    %v485 = vpack.c.bf16 %v368, %v364
    %v486 = vpack.c.bf16 %v378, %v374
    %v495 = vunpack.c.l.b16 %v479
    %v496 = vunpack.c.h.b16 %v479
    %v497 = vunpack.c.l.b16 %v480
    %v498 = vunpack.c.h.b16 %v480
    %v499 = vunpack.c.l.b16 %v481
    %v500 = vunpack.c.h.b16 %v481
    %v501 = vunpack.c.l.b16 %v482
    %v502 = vunpack.c.h.b16 %v482
    %v503 = vunpack.c.l.b16 %v483
    %v504 = vunpack.c.h.b16 %v483
    %v505 = vunpack.c.l.b16 %v484
    %v506 = vunpack.c.h.b16 %v484
    %v507 = vunpack.c.l.b16 %v485
    %v508 = vunpack.c.h.b16 %v485
    %v509 = vunpack.c.l.b16 %v486
    %v510 = vunpack.c.h.b16 %v486
    %v511 = vpack.c.b16 %v495, %v495
    %v512 = vpack.c.b16 %v496, %v496
    %v513 = vpack.c.b16 %v497, %v497
    %v514 = vpack.c.b16 %v498, %v498
    %v515 = vpack.c.b16 %v499, %v499
    %v516 = vpack.c.b16 %v500, %v500
    %v517 = vpack.c.b16 %v501, %v501
    %v518 = vpack.c.b16 %v502, %v502
    %v519 = vpack.c.b16 %v503, %v503
    %v520 = vpack.c.b16 %v504, %v504
    %v521 = vpack.c.b16 %v505, %v505
    %v522 = vpack.c.b16 %v506, %v506
    %v523 = vpack.c.b16 %v507, %v507
    %v524 = vpack.c.b16 %v508, %v508
    %v525 = vpack.c.b16 %v509, %v509
    %v526 = vpack.c.b16 %v510, %v510
    %543 = vst [vmem:[#allocation7] sm:$0xf] %v511
    %544 = vst [vmem:[#allocation7 + $0x4] sm:$0xf] %v512
    %545 = vst [vmem:[#allocation7 + $0x8] sm:$0xf] %v513
    %546 = vst [vmem:[#allocation7 + $0xc] sm:$0xf] %v514
    %547 = vst [vmem:[#allocation7 + $0x10] sm:$0xf] %v515
    %548 = vst [vmem:[#allocation7 + $0x14] sm:$0xf] %v516
    %549 = vst [vmem:[#allocation7 + $0x18] sm:$0xf] %v517
    %550 = vst [vmem:[#allocation7 + $0x1c] sm:$0xf] %v518
    %551 = vst [vmem:[#allocation7 + $0x20] sm:$0xf] %v519
    %552 = vst [vmem:[#allocation7 + $0x24] sm:$0xf] %v520
    %553 = vst [vmem:[#allocation7 + $0x28] sm:$0xf] %v521
    %554 = vst [vmem:[#allocation7 + $0x2c] sm:$0xf] %v522
    %555 = vst [vmem:[#allocation7 + $0x30] sm:$0xf] %v523
    %556 = vst [vmem:[#allocation7 + $0x34] sm:$0xf] %v524
    %557 = vst [vmem:[#allocation7 + $0x38] sm:$0xf] %v525
    %558 = vst [vmem:[#allocation7 + $0x3c] sm:$0xf] %v526
    %v559 = vpack.c.bf16 %v310, %v306
    %v560 = vpack.c.bf16 %v320, %v316
    %v561 = vpack.c.bf16 %v330, %v326
    %v562 = vpack.c.bf16 %v340, %v336
    %v563 = vpack.c.bf16 %v350, %v346
    %v564 = vpack.c.bf16 %v360, %v356
    %v565 = vpack.c.bf16 %v370, %v366
    %v566 = vpack.c.bf16 %v380, %v376
    %v575 = vunpack.c.l.b16 %v559
    %v576 = vunpack.c.h.b16 %v559
    %v577 = vunpack.c.l.b16 %v560
    %v578 = vunpack.c.h.b16 %v560
    %v579 = vunpack.c.l.b16 %v561
    %v580 = vunpack.c.h.b16 %v561
    %v581 = vunpack.c.l.b16 %v562
    %v582 = vunpack.c.h.b16 %v562
    %v583 = vunpack.c.l.b16 %v563
    %v584 = vunpack.c.h.b16 %v563
    %v585 = vunpack.c.l.b16 %v564
    %v586 = vunpack.c.h.b16 %v564
    %v587 = vunpack.c.l.b16 %v565
    %v588 = vunpack.c.h.b16 %v565
    %v589 = vunpack.c.l.b16 %v566
    %v590 = vunpack.c.h.b16 %v566
    %v591 = vpack.c.b16 %v575, %v575
    %v592 = vpack.c.b16 %v576, %v576
    %v593 = vpack.c.b16 %v577, %v577
    %v594 = vpack.c.b16 %v578, %v578
    %v595 = vpack.c.b16 %v579, %v579
    %v596 = vpack.c.b16 %v580, %v580
    %v597 = vpack.c.b16 %v581, %v581
    %v598 = vpack.c.b16 %v582, %v582
    %v599 = vpack.c.b16 %v583, %v583
    %v600 = vpack.c.b16 %v584, %v584
    %v601 = vpack.c.b16 %v585, %v585
    %v602 = vpack.c.b16 %v586, %v586
    %v603 = vpack.c.b16 %v587, %v587
    %v604 = vpack.c.b16 %v588, %v588
    %v605 = vpack.c.b16 %v589, %v589
    %v606 = vpack.c.b16 %v590, %v590
    %623 = vst [vmem:[#allocation8] sm:$0xf] %v591
    %624 = vst [vmem:[#allocation8 + $0x4] sm:$0xf] %v592
    %625 = vst [vmem:[#allocation8 + $0x8] sm:$0xf] %v593
    %626 = vst [vmem:[#allocation8 + $0xc] sm:$0xf] %v594
    %627 = vst [vmem:[#allocation8 + $0x10] sm:$0xf] %v595
    %628 = vst [vmem:[#allocation8 + $0x14] sm:$0xf] %v596
    %629 = vst [vmem:[#allocation8 + $0x18] sm:$0xf] %v597
    %630 = vst [vmem:[#allocation8 + $0x1c] sm:$0xf] %v598
    %631 = vst [vmem:[#allocation8 + $0x20] sm:$0xf] %v599
    %632 = vst [vmem:[#allocation8 + $0x24] sm:$0xf] %v600
    %633 = vst [vmem:[#allocation8 + $0x28] sm:$0xf] %v601
    %634 = vst [vmem:[#allocation8 + $0x2c] sm:$0xf] %v602
    %635 = vst [vmem:[#allocation8 + $0x30] sm:$0xf] %v603
    %636 = vst [vmem:[#allocation8 + $0x34] sm:$0xf] %v604
    %637 = vst [vmem:[#allocation8 + $0x38] sm:$0xf] %v605
    %638 = vst [vmem:[#allocation8 + $0x3c] sm:$0xf] %v606
    %v639 = vpack.c.bf16 %v420, %v417
    %v640 = vpack.c.bf16 %v428, %v425
    %v641 = vpack.c.bf16 %v436, %v433
    %v642 = vpack.c.bf16 %v444, %v441
    %v643 = vpack.c.bf16 %v452, %v449
    %v644 = vpack.c.bf16 %v460, %v457
    %v645 = vpack.c.bf16 %v468, %v465
    %v646 = vpack.c.bf16 %v476, %v473
    %v655 = vunpack.c.l.b16 %v639
    %v656 = vunpack.c.h.b16 %v639
    %v657 = vunpack.c.l.b16 %v640
    %v658 = vunpack.c.h.b16 %v640
    %v659 = vunpack.c.l.b16 %v641
    %v660 = vunpack.c.h.b16 %v641
    %v661 = vunpack.c.l.b16 %v642
    %v662 = vunpack.c.h.b16 %v642
    %v663 = vunpack.c.l.b16 %v643
    %v664 = vunpack.c.h.b16 %v643
    %v665 = vunpack.c.l.b16 %v644
    %v666 = vunpack.c.h.b16 %v644
    %v667 = vunpack.c.l.b16 %v645
    %v668 = vunpack.c.h.b16 %v645
    %v669 = vunpack.c.l.b16 %v646
    %v670 = vunpack.c.h.b16 %v646
    %v671 = vpack.c.b16 %v655, %v655
    %v672 = vpack.c.b16 %v656, %v656
    %v673 = vpack.c.b16 %v657, %v657
    %v674 = vpack.c.b16 %v658, %v658
    %v675 = vpack.c.b16 %v659, %v659
    %v676 = vpack.c.b16 %v660, %v660
    %v677 = vpack.c.b16 %v661, %v661
    %v678 = vpack.c.b16 %v662, %v662
    %v679 = vpack.c.b16 %v663, %v663
    %v680 = vpack.c.b16 %v664, %v664
    %v681 = vpack.c.b16 %v665, %v665
    %v682 = vpack.c.b16 %v666, %v666
    %v683 = vpack.c.b16 %v667, %v667
    %v684 = vpack.c.b16 %v668, %v668
    %v685 = vpack.c.b16 %v669, %v669
    %v686 = vpack.c.b16 %v670, %v670
    %703 = vst [vmem:[#allocation10] sm:$0xf] %v671
    %704 = vst [vmem:[#allocation10 + $0x4] sm:$0xf] %v672
    %705 = vst [vmem:[#allocation10 + $0x8] sm:$0xf] %v673
    %706 = vst [vmem:[#allocation10 + $0xc] sm:$0xf] %v674
    %707 = vst [vmem:[#allocation10 + $0x10] sm:$0xf] %v675
    %708 = vst [vmem:[#allocation10 + $0x14] sm:$0xf] %v676
    %709 = vst [vmem:[#allocation10 + $0x18] sm:$0xf] %v677
    %710 = vst [vmem:[#allocation10 + $0x1c] sm:$0xf] %v678
    %711 = vst [vmem:[#allocation10 + $0x20] sm:$0xf] %v679
    %712 = vst [vmem:[#allocation10 + $0x24] sm:$0xf] %v680
    %713 = vst [vmem:[#allocation10 + $0x28] sm:$0xf] %v681
    %714 = vst [vmem:[#allocation10 + $0x2c] sm:$0xf] %v682
    %715 = vst [vmem:[#allocation10 + $0x30] sm:$0xf] %v683
    %716 = vst [vmem:[#allocation10 + $0x34] sm:$0xf] %v684
    %717 = vst [vmem:[#allocation10 + $0x38] sm:$0xf] %v685
    %718 = vst [vmem:[#allocation10 + $0x3c] sm:$0xf] %v686
    // Predicated region
    $region18: #{tpu_custom_call.1} parent=1 // pred_check
      _
    $region19: #{tpu_custom_call.1} parent=1 // pred_check_branch
      %720 = sbr.rel (0) target = $region21
    $region20: #{tpu_custom_call.1} parent=1 // pred_region
      %s722 = ssub.s32 1024, 1024
      %723 = vsyncadd [#allocation4], %s722
      %s724 = sshll.u32 [#allocation7], 4
      %s725 = int_to_ptr.vmem [resolvable:$true] %s724
      %730 = dma.vmem_to_hbm [thread:$0]  %s725, 1024, %s2, [#allocation4], 64, 64, 4
    $region21: #{tpu_custom_call.1} parent=1 // pred_fallthru
      _
    // Predicated region
    $region22: #{tpu_custom_call.1} parent=1 // pred_check
      _
    $region23: #{tpu_custom_call.1} parent=1 // pred_check_branch
      %732 = sbr.rel (0) target = $region25
    $region24: #{tpu_custom_call.1} parent=1 // pred_region
      %s734 = ssub.s32 1024, 1024
      %735 = vsyncadd [#allocation9], %s734
      %s736 = sshll.u32 [#allocation8], 4
      %s737 = int_to_ptr.vmem [resolvable:$true] %s736
      %742 = dma.vmem_to_hbm [thread:$0]  %s737, 1024, %s3, [#allocation9], 64, 64, 4
    $region25: #{tpu_custom_call.1} parent=1 // pred_fallthru
      _
    // Predicated region
    $region26: #{tpu_custom_call.1} parent=1 // pred_check
      _
    $region27: #{tpu_custom_call.1} parent=1 // pred_check_branch
      %744 = sbr.rel (0) target = $region29
    $region28: #{tpu_custom_call.1} parent=1 // pred_region
      %s746 = ssub.s32 1024, 1024
      %747 = vsyncadd [#allocation9], %s746
      %s748 = sshll.u32 [#allocation10], 4
      %s749 = int_to_ptr.vmem [resolvable:$true] %s748
      %754 = dma.vmem_to_hbm [thread:$0]  %s749, 1024, %s4, [#allocation9], 64, 64, 4
    $region29: #{tpu_custom_call.1} parent=1 // pred_fallthru
      _
    // Predicated region
    $region30: #{tpu_custom_call.1} parent=1 // pred_check
      _
    $region31: #{tpu_custom_call.1} parent=1 // pred_check_branch
      %756 = sbr.rel (0) target = $region33
    $region32: #{tpu_custom_call.1} parent=1 // pred_region
      %757 = dma.done [#allocation4], 1024
    $region33: #{tpu_custom_call.1} parent=1 // pred_fallthru
      _
    // Predicated region
    $region34: #{tpu_custom_call.1} parent=1 // pred_check
      _
    $region35: #{tpu_custom_call.1} parent=1 // pred_check_branch
      %759 = sbr.rel (0) target = $region37
    $region36: #{tpu_custom_call.1} parent=1 // pred_region
      %760 = dma.done [#allocation9], 1024
    $region37: #{tpu_custom_call.1} parent=1 // pred_fallthru
      _
    // Predicated region
    $region38: #{tpu_custom_call.1} parent=1 // pred_check
      _
    $region39: #{tpu_custom_call.1} parent=1 // pred_check_branch
      %762 = sbr.rel (0) target = $region41
    $region40: #{tpu_custom_call.1} parent=1 // pred_region
      %763 = dma.done [#allocation9], 1024
    $region41: #{tpu_custom_call.1} parent=1 // pred_fallthru
      _
    %764 = vsyncpa [#allocation3], 1
    %765 = vsyncpa [#allocation6], 1
    %766 = vsyncpa [#allocation4], 1
    %767 = vsyncpa [#allocation9], 1

</llo_original>
